<compile_context>
chip_gen: v5e
topology: v5e:2x2
jax: 0.10.0
libtpu: 0.0.40
codegen_flags: <defaults>
</compile_context>

<pallas_src>
import functools

import jax
import jax.numpy as jnp
from jax.experimental import pallas as pl
from jax.experimental.pallas import tpu as pltpu


def _round_up(x, m):
    return ((x + m - 1) // m) * m


def _rnn_chunk_kernel(x_ref, h0_ref, wx_ref, wh_ref, b_ref, out_ref, h_scr,
                      *, steps, batch):
    """One grid step == one chunk of `steps` RNN timesteps (fully unrolled).

    x_ref:   (steps*batch, I)     input rows for this chunk, t-major/b-minor (streamed)
    h0_ref:  (1, H)               initial hidden row (resident; read at chunk 0 only)
    wx_ref:  (I, Npad)            fused [i2h | i2o | 0-pad] weights, input rows (resident)
    wh_ref:  (H, Npad)            fused weights, hidden rows (resident)
    b_ref:   (1, Npad)            fused bias (resident)
    out_ref: (steps*batch, Npad)  fused per-step output rows [i2h | i2o | 0]
    h_scr:   (1, H)               single-row hidden carry (persists across chunks)
    """
    c = pl.program_id(0)
    H = h_scr.shape[1]

    @pl.when(c == 0)
    def _():
        h_scr[...] = h0_ref[...]

    # Batched input projection + bias: one sublane-dense GEMM per chunk,
    # hoisted OFF the serial h-dependency chain.
    xwb = (
        jnp.dot(x_ref[...], wx_ref[...], preferred_element_type=jnp.float32)
        + b_ref[...]
    )                                                       # (steps*batch, Npad)

    # Serial recurrence, fully unrolled with static indices: only the 1-row
    # h @ Wh dot and the add sit on the dependency chain.
    h = h_scr[...]                                          # (1, H)
    for t in range(steps):
        hw = jnp.dot(h, wh_ref[...],
                     preferred_element_type=jnp.float32)    # (1, Npad)
        acc = xwb[t * batch:(t + 1) * batch, :] + hw        # (batch, Npad)
        out_ref[t * batch:(t + 1) * batch, :] = acc.astype(out_ref.dtype)
        # PyTorch: `hidden, output = self.i2h(combined)` -> new hidden is ROW 0
        # of the i2h block; carried as a single row (all batch rows identical).
        h = acc[0:1, :H]
    h_scr[...] = h


def prepare_params(w_i2h, b_i2h, w_i2o, b_i2o, input_size):
    """One-time weight prep (hoisted out of the hot path): transpose, fuse the
    two Linear layers along N, zero-pad N to 128 lanes, split K into input /
    hidden rows."""
    H, D = w_i2h.shape
    O = w_i2o.shape[0]
    I = int(input_size)
    assert D == I + H and w_i2o.shape[1] == D
    N = H + O
    Npad = pl.cdiv(N, 128) * 128                              # lane-dense width
    w_fused = jnp.concatenate([w_i2h.T, w_i2o.T], axis=1)     # (D, N)
    w_fused = jnp.pad(w_fused, ((0, 0), (0, Npad - N)))       # (D, Npad)
    b_fused = jnp.concatenate([b_i2h, b_i2o]).reshape(1, N)
    b_fused = jnp.pad(b_fused, ((0, 0), (0, Npad - N)))       # (1, Npad)
    # TODO(synk): cast wx/wh to bf16 here for large H (keep f32 accumulation).
    return dict(
        wx=w_fused[:I],            # (I, Npad)  split-K: input rows
        wh=w_fused[I:],            # (H, Npad)  split-K: hidden rows
        b=b_fused,                 # (1, Npad)
        I=I, H=int(H), O=int(O), N=int(N), Npad=int(Npad),
    )


def rnn_forward_sequence(xs, h0, params, *, chunk=None):
    """Run the whole recurrence (T steps) inside a single pallas_call.

    xs: (T, B, I) float32, h0: (1, H) float32 (== module.init_hidden(); it is
    broadcast across the batch for the cat, exactly as in the reference loop).
    Returns (outputs (T, B, O), final_hidden (H,)).
    """
    T, B, I = xs.shape
    H, O, N, Npad = params["H"], params["O"], params["N"], params["Npad"]
    assert B == 2, "PyTorch tuple-unpack of i2h output along dim 0 requires batch == 2"
    assert I == params["I"]
    h0 = jnp.asarray(h0, jnp.float32).reshape(1, H)

    # Time-chunk size: fully unrolled inside the kernel body. Keep chunk*B a
    # multiple of 8 sublanes; cap the unroll length.
    if chunk is None:
        chunk = min(32, _round_up(T, 4))
    chunk = max(4, _round_up(chunk, 4))
    Tpad = pl.cdiv(T, chunk) * chunk
    num_chunks = Tpad // chunk

    # (T, B, I) -> (Tpad*B, I): t-major / b-minor rows (contiguous reshape),
    # zero-padded time steps are computed but sliced off afterwards.
    x2d = xs.astype(jnp.float32).reshape(T * B, I)
    if Tpad != T:
        x2d = jnp.pad(x2d, ((0, (Tpad - T) * B), (0, 0)))

    wx, wh, b = params["wx"], params["wh"], params["b"]

    flops = 2 * T * B * (I + H) * N                   # real work (N, not Npad)
    bytes_accessed = 4 * (x2d.size + h0.size + wx.size + wh.size + b.size
                          + Tpad * B * Npad)

    kernel = functools.partial(_rnn_chunk_kernel, steps=chunk, batch=B)

    slab = pl.pallas_call(
        kernel,
        out_shape=jax.ShapeDtypeStruct((Tpad * B, Npad), jnp.float32),
        grid=(num_chunks,),
        in_specs=[
            pl.BlockSpec((chunk * B, I), lambda c: (c, 0)),   # stream x chunk
            pl.BlockSpec((1, H), lambda c: (0, 0)),           # h0   (resident)
            pl.BlockSpec((I, Npad), lambda c: (0, 0)),        # Wx   (resident)
            pl.BlockSpec((H, Npad), lambda c: (0, 0)),        # Wh   (resident)
            pl.BlockSpec((1, Npad), lambda c: (0, 0)),        # bias (resident)
        ],
        out_specs=pl.BlockSpec((chunk * B, Npad), lambda c: (c, 0)),
        scratch_shapes=[pltpu.VMEM((1, H), jnp.float32)],     # hidden carry
        compiler_params=pltpu.CompilerParams(
            dimension_semantics=("arbitrary",),               # time = recurrence
        ),
        cost_estimate=pl.CostEstimate(
            flops=flops, transcendentals=0, bytes_accessed=bytes_accessed),
    )(x2d, h0, wx, wh, b)

    slab = slab.reshape(Tpad, B, Npad)
    outputs = slab[:T, :, H:H + O]         # (T, B, O)  i2o block of each step
    final_hidden = slab[T - 1, 0, :H]      # (H,)       row 0 of last i2h block
    return outputs, final_hidden


def rnn_forward(x, hidden, params):
    """Single-step forward matching the PyTorch module exactly.
    x: (B, I), hidden: (1, H).  Returns (output (B, O), new_hidden (H,)).
    NOTE: prefer batching many steps through rnn_forward_sequence -- a T=1
    pallas_call per step is pure dispatch overhead."""
    outputs, new_hidden = rnn_forward_sequence(x[None], hidden, params)
    return outputs[0], new_hidden


def init_params(key, input_size, hidden_size, output_size):
    """Deterministic init mimicking nn.Linear's U(-1/sqrt(fan_in), 1/sqrt(fan_in))."""
    d = input_size + hidden_size
    k1, k2, k3, k4 = jax.random.split(key, 4)
    bound = 1.0 / jnp.sqrt(jnp.float32(d))
    w_i2h = jax.random.uniform(k1, (hidden_size, d), jnp.float32, -bound, bound)
    b_i2h = jax.random.uniform(k2, (hidden_size,), jnp.float32, -bound, bound)
    w_i2o = jax.random.uniform(k3, (output_size, d), jnp.float32, -bound, bound)
    b_i2o = jax.random.uniform(k4, (output_size,), jnp.float32, -bound, bound)
    return w_i2h, b_i2h, w_i2o, b_i2o


if __name__ == "__main__":
    input_size, hidden_size, output_size = 16, 32, 8
    batch = 2          # required by the tuple-unpack of i2h's output
    seq_len = 8

    key = jax.random.PRNGKey(0)
    kx, kp = jax.random.split(key)
    xs = jax.random.normal(kx, (seq_len, batch, input_size), jnp.float32)
    h0 = jnp.zeros((1, hidden_size), jnp.float32)    # == module.init_hidden()

    w_i2h, b_i2h, w_i2o, b_i2o = init_params(kp, input_size, hidden_size, output_size)
    params = prepare_params(w_i2h, b_i2h, w_i2o, b_i2o, input_size)

    # --- single-step forward: exact PyTorch module semantics -----------------
    out1, hid1 = rnn_forward(xs[0], h0, params)
    jax.block_until_ready((out1, hid1))

    hb = jnp.broadcast_to(h0, (batch, hidden_size))
    combined = jnp.concatenate([xs[0], hb], axis=1)
    ref_o1 = combined @ w_i2o.T + b_i2o
    ref_h1 = (combined @ w_i2h.T + b_i2h)[0]
    assert out1.shape == (batch, output_size)
    assert hid1.shape == (hidden_size,)
    assert jnp.allclose(out1, ref_o1, atol=1e-4), float(jnp.max(jnp.abs(out1 - ref_o1)))
    assert jnp.allclose(hid1, ref_h1, atol=1e-4), float(jnp.max(jnp.abs(hid1 - ref_h1)))

    # --- full recurrence inside one pallas_call -------------------------------
    outs, hid_T = rnn_forward_sequence(xs, h0, params)
    jax.block_until_ready((outs, hid_T))

    # Pure-JAX reference: apply the module's per-step forward T times,
    # broadcasting the (H,) hidden back to (B, H) between steps.
    h = jnp.broadcast_to(h0, (batch, hidden_size))
    ref_outs = []
    for t in range(seq_len):
        comb = jnp.concatenate([xs[t], h], axis=1)
        i2h = comb @ w_i2h.T + b_i2h
        ref_outs.append(comb @ w_i2o.T + b_i2o)
        h = jnp.broadcast_to(i2h[0][None, :], (batch, hidden_size))
    ref_outs = jnp.stack(ref_outs)
    ref_hid_T = h[0]

    assert outs.shape == (seq_len, batch, output_size)
    assert hid_T.shape == (hidden_size,)
    assert jnp.allclose(outs, ref_outs, atol=1e-4), float(jnp.max(jnp.abs(outs - ref_outs)))
    assert jnp.allclose(hid_T, ref_hid_T, atol=1e-4), float(jnp.max(jnp.abs(hid_T - ref_hid_T)))

    print("KERNEL_OK")
</pallas_src>

<mosaic_0001>
module attributes {stable_mosaic.version = 11 : i64} {
  func.func @_rnn_chunk_kernel(%arg0: i32, %arg1: memref<8x16xf32, #tpu.memory_space<vmem>>, %arg2: memref<1x32xf32, #tpu.memory_space<vmem>>, %arg3: memref<16x128xf32, #tpu.memory_space<vmem>>, %arg4: memref<32x128xf32, #tpu.memory_space<vmem>>, %arg5: memref<1x128xf32, #tpu.memory_space<vmem>>, %arg6: memref<8x128xf32, #tpu.memory_space<vmem>>, %arg7: memref<1x32xf32, #tpu.memory_space<vmem>>) attributes {dimension_semantics = [#tpu.dimension_semantics<arbitrary>], iteration_bounds = array<i64: 1>, scalar_prefetch = 0 : i64, scratch_operands = 1 : i64, tpu.core_type = #tpu.core_type<tc>, window_params = [{transform_indices = @transform_0, window_bounds = array<i64: 8, 16>}, {pipeline_mode = #tpu.pipeline_mode<synchronous>, transform_indices = @transform_1, window_bounds = array<i64: 1, 32>}, {pipeline_mode = #tpu.pipeline_mode<synchronous>, transform_indices = @transform_2, window_bounds = array<i64: 16, 128>}, {pipeline_mode = #tpu.pipeline_mode<synchronous>, transform_indices = @transform_3, window_bounds = array<i64: 32, 128>}, {pipeline_mode = #tpu.pipeline_mode<synchronous>, transform_indices = @transform_4, window_bounds = array<i64: 1, 128>}, {transform_indices = @transform_5, window_bounds = array<i64: 8, 128>}]} {
    %c0_i32 = arith.constant 0 : i32
    %0 = arith.cmpi eq, %arg0, %c0_i32 : i32
    %1 = arith.extui %0 : i1 to i32
    %c0_i32_0 = arith.constant 0 : i32
    %2 = arith.cmpi ne, %1, %c0_i32_0 : i32
    scf.if %2 {
      %c0_27 = arith.constant 0 : index
      %c0_28 = arith.constant 0 : index
      %39 = vector.load %arg2[%c0_27, %c0_28] : memref<1x32xf32, #tpu.memory_space<vmem>>, vector<1x32xf32>
      %c0_29 = arith.constant 0 : index
      %c0_30 = arith.constant 0 : index
      %40 = vector.load %arg7[%c0_29, %c0_30] : memref<1x32xf32, #tpu.memory_space<vmem>>, vector<1x32xf32>
      tpu.vector_store %arg7[%c0_29, %c0_30], %39 {strides = array<i32>} : memref<1x32xf32, #tpu.memory_space<vmem>>, vector<1x32xf32>,
    } else {
    }
    %c0 = arith.constant 0 : index
    %c0_1 = arith.constant 0 : index
    %3 = vector.load %arg1[%c0, %c0_1] : memref<8x16xf32, #tpu.memory_space<vmem>>, vector<8x16xf32>
    %c0_2 = arith.constant 0 : index
    %c0_3 = arith.constant 0 : index
    %4 = vector.load %arg3[%c0_2, %c0_3] : memref<16x128xf32, #tpu.memory_space<vmem>>, vector<16x128xf32>
    %cst = arith.constant dense<0.000000e+00> : vector<8x128xf32>
    %5 = tpu.matmul %3, %4, %cst {dimension_numbers = #tpu.dot_dimension_numbers<[1], [0], [0], [1], [0, 0, 1, 1], [], []>} : vector<8x16xf32>, vector<16x128xf32>, vector<8x128xf32> -> vector<8x128xf32>
    %c0_4 = arith.constant 0 : index
    %c0_5 = arith.constant 0 : index
    %6 = vector.load %arg5[%c0_4, %c0_5] : memref<1x128xf32, #tpu.memory_space<vmem>>, vector<1x128xf32>
    %7 = vector.broadcast %6 : vector<1x128xf32> to vector<8x128xf32>
    %8 = arith.addf %5, %7 : vector<8x128xf32>
    %c0_6 = arith.constant 0 : index
    %c0_7 = arith.constant 0 : index
    %9 = vector.load %arg7[%c0_6, %c0_7] : memref<1x32xf32, #tpu.memory_space<vmem>>, vector<1x32xf32>
    %c0_8 = arith.constant 0 : index
    %c0_9 = arith.constant 0 : index
    %10 = vector.load %arg4[%c0_8, %c0_9] : memref<32x128xf32, #tpu.memory_space<vmem>>, vector<32x128xf32>
    %cst_10 = arith.constant dense<0.000000e+00> : vector<1x128xf32>
    %11 = tpu.matmul %9, %10, %cst_10 {dimension_numbers = #tpu.dot_dimension_numbers<[1], [0], [0], [1], [0, 0, 1, 1], [], []>} : vector<1x32xf32>, vector<32x128xf32>, vector<1x128xf32> -> vector<1x128xf32>
    %12 = vector.extract_strided_slice %8 {offsets = [0, 0], sizes = [2, 128], strides = [1, 1]} : vector<8x128xf32> to vector<2x128xf32>
    %13 = vector.broadcast %11 : vector<1x128xf32> to vector<2x128xf32>
    %14 = arith.addf %12, %13 : vector<2x128xf32>
    %c0_11 = arith.constant 0 : index
    %c0_12 = arith.constant 0 : index
    %15 = vector.load %arg6[%c0_11, %c0_12] : memref<8x128xf32, #tpu.memory_space<vmem>>, vector<2x128xf32>
    tpu.vector_store %arg6[%c0_11, %c0_12], %14 {strides = array<i32>} : memref<8x128xf32, #tpu.memory_space<vmem>>, vector<2x128xf32>,
    %16 = vector.extract_strided_slice %14 {offsets = [0, 0], sizes = [1, 32], strides = [1, 1]} : vector<2x128xf32> to vector<1x32xf32>
    %c0_13 = arith.constant 0 : index
    %c0_14 = arith.constant 0 : index
    %17 = vector.load %arg4[%c0_13, %c0_14] : memref<32x128xf32, #tpu.memory_space<vmem>>, vector<32x128xf32>
    %cst_15 = arith.constant dense<0.000000e+00> : vector<1x128xf32>
    %18 = tpu.matmul %16, %17, %cst_15 {dimension_numbers = #tpu.dot_dimension_numbers<[1], [0], [0], [1], [0, 0, 1, 1], [], []>} : vector<1x32xf32>, vector<32x128xf32>, vector<1x128xf32> -> vector<1x128xf32>
    %19 = vector.extract_strided_slice %8 {offsets = [2, 0], sizes = [2, 128], strides = [1, 1]} : vector<8x128xf32> to vector<2x128xf32>
    %20 = vector.broadcast %18 : vector<1x128xf32> to vector<2x128xf32>
    %21 = arith.addf %19, %20 : vector<2x128xf32>
    %c2 = arith.constant 2 : index
    %c0_16 = arith.constant 0 : index
    %22 = vector.load %arg6[%c2, %c0_16] : memref<8x128xf32, #tpu.memory_space<vmem>>, vector<2x128xf32>
    tpu.vector_store %arg6[%c2, %c0_16], %21 {strides = array<i32>} : memref<8x128xf32, #tpu.memory_space<vmem>>, vector<2x128xf32>,
    %23 = vector.extract_strided_slice %21 {offsets = [0, 0], sizes = [1, 32], strides = [1, 1]} : vector<2x128xf32> to vector<1x32xf32>
    %c0_17 = arith.constant 0 : index
    %c0_18 = arith.constant 0 : index
    %24 = vector.load %arg4[%c0_17, %c0_18] : memref<32x128xf32, #tpu.memory_space<vmem>>, vector<32x128xf32>
    %cst_19 = arith.constant dense<0.000000e+00> : vector<1x128xf32>
    %25 = tpu.matmul %23, %24, %cst_19 {dimension_numbers = #tpu.dot_dimension_numbers<[1], [0], [0], [1], [0, 0, 1, 1], [], []>} : vector<1x32xf32>, vector<32x128xf32>, vector<1x128xf32> -> vector<1x128xf32>
    %26 = vector.extract_strided_slice %8 {offsets = [4, 0], sizes = [2, 128], strides = [1, 1]} : vector<8x128xf32> to vector<2x128xf32>
    %27 = vector.broadcast %25 : vector<1x128xf32> to vector<2x128xf32>
    %28 = arith.addf %26, %27 : vector<2x128xf32>
    %c4 = arith.constant 4 : index
    %c0_20 = arith.constant 0 : index
    %29 = vector.load %arg6[%c4, %c0_20] : memref<8x128xf32, #tpu.memory_space<vmem>>, vector<2x128xf32>
    tpu.vector_store %arg6[%c4, %c0_20], %28 {strides = array<i32>} : memref<8x128xf32, #tpu.memory_space<vmem>>, vector<2x128xf32>,
    %30 = vector.extract_strided_slice %28 {offsets = [0, 0], sizes = [1, 32], strides = [1, 1]} : vector<2x128xf32> to vector<1x32xf32>
    %c0_21 = arith.constant 0 : index
    %c0_22 = arith.constant 0 : index
    %31 = vector.load %arg4[%c0_21, %c0_22] : memref<32x128xf32, #tpu.memory_space<vmem>>, vector<32x128xf32>
    %cst_23 = arith.constant dense<0.000000e+00> : vector<1x128xf32>
    %32 = tpu.matmul %30, %31, %cst_23 {dimension_numbers = #tpu.dot_dimension_numbers<[1], [0], [0], [1], [0, 0, 1, 1], [], []>} : vector<1x32xf32>, vector<32x128xf32>, vector<1x128xf32> -> vector<1x128xf32>
    %33 = vector.extract_strided_slice %8 {offsets = [6, 0], sizes = [2, 128], strides = [1, 1]} : vector<8x128xf32> to vector<2x128xf32>
    %34 = vector.broadcast %32 : vector<1x128xf32> to vector<2x128xf32>
    %35 = arith.addf %33, %34 : vector<2x128xf32>
    %c6 = arith.constant 6 : index
    %c0_24 = arith.constant 0 : index
    %36 = vector.load %arg6[%c6, %c0_24] : memref<8x128xf32, #tpu.memory_space<vmem>>, vector<2x128xf32>
    tpu.vector_store %arg6[%c6, %c0_24], %35 {strides = array<i32>} : memref<8x128xf32, #tpu.memory_space<vmem>>, vector<2x128xf32>,
    %37 = vector.extract_strided_slice %35 {offsets = [0, 0], sizes = [1, 32], strides = [1, 1]} : vector<2x128xf32> to vector<1x32xf32>
    %c0_25 = arith.constant 0 : index
    %c0_26 = arith.constant 0 : index
    %38 = vector.load %arg7[%c0_25, %c0_26] : memref<1x32xf32, #tpu.memory_space<vmem>>, vector<1x32xf32>
    tpu.vector_store %arg7[%c0_25, %c0_26], %37 {strides = array<i32>} : memref<1x32xf32, #tpu.memory_space<vmem>>, vector<1x32xf32>,
    return
  }
  func.func @transform_0(%arg0: i32) -> (i32, i32) {
    %c0_i32 = arith.constant 0 : i32
    %c0_i32_0 = arith.constant 0 : i32
    return %arg0, %c0_i32 : i32, i32
  }
  func.func @transform_1(%arg0: i32) -> (i32, i32) {
    %c0_i32 = arith.constant 0 : i32
    %c0_i32_0 = arith.constant 0 : i32
    %c0_i32_1 = arith.constant 0 : i32
    return %c0_i32, %c0_i32_0 : i32, i32
  }
  func.func @transform_2(%arg0: i32) -> (i32, i32) {
    %c0_i32 = arith.constant 0 : i32
    %c0_i32_0 = arith.constant 0 : i32
    %c0_i32_1 = arith.constant 0 : i32
    return %c0_i32, %c0_i32_0 : i32, i32
  }
  func.func @transform_3(%arg0: i32) -> (i32, i32) {
    %c0_i32 = arith.constant 0 : i32
    %c0_i32_0 = arith.constant 0 : i32
    %c0_i32_1 = arith.constant 0 : i32
    return %c0_i32, %c0_i32_0 : i32, i32
  }
  func.func @transform_4(%arg0: i32) -> (i32, i32) {
    %c0_i32 = arith.constant 0 : i32
    %c0_i32_0 = arith.constant 0 : i32
    %c0_i32_1 = arith.constant 0 : i32
    return %c0_i32, %c0_i32_0 : i32, i32
  }
  func.func @transform_5(%arg0: i32) -> (i32, i32) {
    %c0_i32 = arith.constant 0 : i32
    %c0_i32_0 = arith.constant 0 : i32
    return %arg0, %c0_i32 : i32, i32
  }
}

</mosaic_0001>

<llo_original>
// kernel: tpu_custom_call.1
$region0: #{tpu_custom_call.1}
  #allocation0 [shape = 'u32[]', space=smem, size = 0x4, offset = 0x4, fixed_abs, tag = 'smem constant byte address 0x4 - core index']
  #allocation1 [shape = 'u32[72,128]{1,0:T(1,128)}', space=vmem, size = 0x9000, scoped, tag = 'internal scratch']
  #allocation2 [shape = 'f32[1,32]{1,0:T(1,128)}', space=vmem, size = 0x200, scoped, tag = 'scratch operand']
  %s0 = inlined_call_operand.hbm [shape: f32[8,16], index: 0, kind: input, shape index: {}]
  %s1 = inlined_call_operand.hbm [shape: f32[1,32], index: 1, kind: input, shape index: {}]
  %s2 = inlined_call_operand.hbm [shape: f32[16,128], index: 2, kind: input, shape index: {}]
  %s3 = inlined_call_operand.hbm [shape: f32[32,128], index: 3, kind: input, shape index: {}]
  %s4 = inlined_call_operand.vmem [shape: f32[1,128], index: 4, kind: input, shape index: {}]
  %s5 = inlined_call_operand.hbm [shape: f32[8,128], index: 5, kind: output, shape index: {}]
  %s6 = sld [smem:[#allocation0]]
  $region50: #{tpu_custom_call.1} parent=0
    _
  %s8 = ssub.s32 1, %s6
  %s9 = scalar_select 0, %s8, %s6
  $region1: #{tpu_custom_call.1} parent=0
    #allocation3 [shape = 'u8[4096]{0}', space=vmem, size = 0x1000, scoped, tag = 'input window, operand 0, single buffered']
    #allocation4 [shape = 's32[1]{0}', space=sflag, size = 0x4, scoped, tag = 'scoped memory for tpu_custom_call.1']
    #allocation5 [shape = 's32[1]{0}', space=sflag, size = 0x4, scoped, tag = 'scoped memory for tpu_custom_call.1']
    #allocation6 [shape = 'u8[512]{0}', space=vmem, size = 0x400, scoped, tag = 'input window, operand 1, single buffered']
    #allocation7 [shape = 's32[1]{0}', space=sflag, size = 0x4, scoped, tag = 'scoped memory for tpu_custom_call.1']
    #allocation8 [shape = 'u8[8192]{0}', space=vmem, size = 0x2000, scoped, tag = 'input window, operand 2, single buffered']
    #allocation9 [shape = 'u8[16384]{0}', space=vmem, size = 0x4000, scoped, tag = 'input window, operand 3, single buffered']
    #allocation10 [shape = 's32[1]{0}', space=sflag, size = 0x4, scoped, tag = 'scoped memory for tpu_custom_call.1']
    #allocation11 [shape = 'u8[4096]{0}', space=vmem, size = 0x1000, scoped, tag = 'output window, operand 0, single buffered']
    %10 = vsyncpa [#allocation4], 0
    %11 = vsyncpa [#allocation7], 0
    %12 = vsyncpa [#allocation10], 0
    %13 = vsyncpa [#allocation5], 0
    // Predicated region
    $region2: #{tpu_custom_call.1} parent=1 // pred_check
      _
    $region3: #{tpu_custom_call.1} parent=1 // pred_check_branch
      %15 = sbr.rel (0) target = $region5
    $region4: #{tpu_custom_call.1} parent=1 // pred_region
      %17 = vsyncadd [#allocation4], 0
      %s19 = sshll.u32 %s0, 4
      %s20 = int_to_ptr.hbm [resolvable:$true] %s19
      %s21 = sshll.u32 [#allocation3], 4
      %s22 = int_to_ptr.vmem [resolvable:$true] %s21
      %24 = dma.hbm_to_vmem [thread:$0]  %s20, 128, %s22, [#allocation4]
    $region5: #{tpu_custom_call.1} parent=1 // pred_fallthru
      _
    // Predicated region
    $region6: #{tpu_custom_call.1} parent=1 // pred_check
      _
    $region7: #{tpu_custom_call.1} parent=1 // pred_check_branch
      %26 = sbr.rel (0) target = $region9
    $region8: #{tpu_custom_call.1} parent=1 // pred_region
      %28 = vsyncadd [#allocation7], 0
      %s30 = sshll.u32 %s1, 4
      %s31 = int_to_ptr.hbm [resolvable:$true] %s30
      %s32 = sshll.u32 [#allocation6], 4
      %s33 = int_to_ptr.vmem [resolvable:$true] %s32
      %35 = dma.hbm_to_vmem [thread:$0]  %s31, 16, %s33, [#allocation7]
    $region9: #{tpu_custom_call.1} parent=1 // pred_fallthru
      _
    // Predicated region
    $region10: #{tpu_custom_call.1} parent=1 // pred_check
      _
    $region11: #{tpu_custom_call.1} parent=1 // pred_check_branch
      %37 = sbr.rel (0) target = $region13
    $region12: #{tpu_custom_call.1} parent=1 // pred_region
      %39 = vsyncadd [#allocation7], 0
      %s40 = sshll.u32 %s2, 4
      %s41 = int_to_ptr.hbm [resolvable:$true] %s40
      %s42 = sshll.u32 [#allocation8], 4
      %s43 = int_to_ptr.vmem [resolvable:$true] %s42
      %48 = dma.hbm_to_vmem [thread:$0]  %s41, 256, %s43, [#allocation7], 128, 128, 8
    $region13: #{tpu_custom_call.1} parent=1 // pred_fallthru
      _
    // Predicated region
    $region14: #{tpu_custom_call.1} parent=1 // pred_check
      _
    $region15: #{tpu_custom_call.1} parent=1 // pred_check_branch
      %50 = sbr.rel (0) target = $region17
    $region16: #{tpu_custom_call.1} parent=1 // pred_region
      %52 = vsyncadd [#allocation10], 0
      %s53 = sshll.u32 %s3, 4
      %s54 = int_to_ptr.hbm [resolvable:$true] %s53
      %s55 = sshll.u32 [#allocation9], 4
      %s56 = int_to_ptr.vmem [resolvable:$true] %s55
      %61 = dma.hbm_to_vmem [thread:$0]  %s54, 512, %s56, [#allocation10], 128, 128, 8
    $region17: #{tpu_custom_call.1} parent=1 // pred_fallthru
      _
    // Predicated region
    $region18: #{tpu_custom_call.1} parent=1 // pred_check
      _
    $region19: #{tpu_custom_call.1} parent=1 // pred_check_branch
      %63 = sbr.rel (0) target = $region21
    $region20: #{tpu_custom_call.1} parent=1 // pred_region
      _
    $region21: #{tpu_custom_call.1} parent=1 // pred_fallthru
      _
    // Predicated region
    $region22: #{tpu_custom_call.1} parent=1 // pred_check
      _
    $region23: #{tpu_custom_call.1} parent=1 // pred_check_branch
      %65 = sbr.rel (0) target = $region25
    $region24: #{tpu_custom_call.1} parent=1 // pred_region
      %67 = dma.done [#allocation4], 128
    $region25: #{tpu_custom_call.1} parent=1 // pred_fallthru
      _
    // Predicated region
    $region26: #{tpu_custom_call.1} parent=1 // pred_check
      _
    $region27: #{tpu_custom_call.1} parent=1 // pred_check_branch
      %69 = sbr.rel (0) target = $region29
    $region28: #{tpu_custom_call.1} parent=1 // pred_region
      %71 = dma.done [#allocation7], 16
    $region29: #{tpu_custom_call.1} parent=1 // pred_fallthru
      _
    // Predicated region
    $region30: #{tpu_custom_call.1} parent=1 // pred_check
      _
    $region31: #{tpu_custom_call.1} parent=1 // pred_check_branch
      %73 = sbr.rel (0) target = $region33
    $region32: #{tpu_custom_call.1} parent=1 // pred_region
      %75 = dma.done [#allocation7], 256
    $region33: #{tpu_custom_call.1} parent=1 // pred_fallthru
      _
    // Predicated region
    $region34: #{tpu_custom_call.1} parent=1 // pred_check
      _
    $region35: #{tpu_custom_call.1} parent=1 // pred_check_branch
      %77 = sbr.rel (0) target = $region37
    $region36: #{tpu_custom_call.1} parent=1 // pred_region
      %79 = dma.done [#allocation10], 512
    $region37: #{tpu_custom_call.1} parent=1 // pred_fallthru
      _
    %p80 = scmp.eq.s32.totalorder 0, 0
    // Predicated region
    $region38: #{tpu_custom_call.1} parent=1 // pred_check
      %p81 = pneg %p80
    $region39: #{tpu_custom_call.1} parent=1 // pred_check_branch
      %83 = sbr.rel (%p81) target = $region41
    $region40: #{tpu_custom_call.1} parent=1 // pred_region
      %v84 = vld [vmem:[#allocation6] sm:$0x1]
      %vm85 = vcmask 253952
      %86 = vst.msk [vmem:[#allocation2] sm:$0x1] %vm85, %v84
    $region41: #{tpu_custom_call.1} parent=1 // pred_fallthru
      _
    %v87 = vld [vmem:[#allocation3] sm:$0xff]
    %v88 = vld [vmem:[#allocation8] sm:$0xff]
    %v89 = vld [vmem:[#allocation8 + $0x8] sm:$0xff]
    %v90 = vld [vmem:[%s4] sm:$0x1]
    %v92 = vperm.slane %v90, 0
    %vm94 = vcmask 130048
    %v96 = vsel %vm94, %v87, 0
    %98 = vmatpush.msra.mxu0 0.0
    %99 = vmatpush.msra.mxu0 0.0
    %100 = vmatpush.msra.mxu0 0.0
    %101 = vmatpush.msra.mxu0 0.0
    %102 = vmatpush.msra.mxu0 0.0
    %103 = vmatpush.msra.mxu0 0.0
    %104 = vmatpush.msra.mxu0 0.0
    %105 = vmatpush.msra.mxu0 0.0
    %106 = vmatpush.msra.mxu0 0.0
    %107 = vmatpush.msra.mxu0 0.0
    %108 = vmatpush.msra.mxu0 0.0
    %109 = vmatpush.msra.mxu0 0.0
    %110 = vmatpush.msra.mxu0 0.0
    %111 = vmatpush.msra.mxu0 0.0
    %112 = vmatpush.msra.mxu0 %v89
    %113 = vmatpush.msra.mxu0 %v88
    %114 = vmatmul.f32.gmra.mxu0 %v96
    %v115 = vpop.f32.mrf.mxu0
    %v116 = vadd.f32 %v92, %v115
    %117 = vdwg.mxu0
    %v118 = vld [vmem:[#allocation2] sm:$0x1]
    %v119 = vld [vmem:[#allocation9] sm:$0xff]
    %v120 = vld [vmem:[#allocation9 + $0x8] sm:$0xff]
    %v121 = vld [vmem:[#allocation9 + $0x10] sm:$0xff]
    %v122 = vld [vmem:[#allocation9 + $0x18] sm:$0xff]
    %vm123 = vcmask 261120
    %v125 = vsel %vm123, %v118, 0
    %127 = vmatpush.msra.mxu0 0.0
    %128 = vmatpush.msra.mxu0 0.0
    %129 = vmatpush.msra.mxu0 0.0
    %130 = vmatpush.msra.mxu0 0.0
    %131 = vmatpush.msra.mxu0 0.0
    %132 = vmatpush.msra.mxu0 0.0
    %133 = vmatpush.msra.mxu0 0.0
    %134 = vmatpush.msra.mxu0 0.0
    %135 = vmatpush.msra.mxu0 0.0
    %136 = vmatpush.msra.mxu0 0.0
    %137 = vmatpush.msra.mxu0 0.0
    %138 = vmatpush.msra.mxu0 0.0
    %139 = vmatpush.msra.mxu0 %v122
    %140 = vmatpush.msra.mxu0 %v121
    %141 = vmatpush.msra.mxu0 %v120
    %142 = vmatpush.msra.mxu0 %v119
    %143 = vmatmul.f32.gmra.mxu0 %v125
    %v144 = vpop.f32.mrf.mxu0
    %v145 = vadd.f32 0.0, %v144
    %146 = vdwg.mxu0
    %v147 = vperm.slane %v145, 0
    %v148 = vadd.f32 %v116, %v147
    %149 = vst [vmem:[#allocation11] sm:$0x3] %v148
    %v150 = vld [vmem:[#allocation9] sm:$0xff]
    %v151 = vld [vmem:[#allocation9 + $0x8] sm:$0xff]
    %v152 = vld [vmem:[#allocation9 + $0x10] sm:$0xff]
    %v153 = vld [vmem:[#allocation9 + $0x18] sm:$0xff]
    %v155 = vsel %vm123, %v148, 0
    %157 = vmatpush.msra.mxu0 0.0
    %158 = vmatpush.msra.mxu0 0.0
    %159 = vmatpush.msra.mxu0 0.0
    %160 = vmatpush.msra.mxu0 0.0
    %161 = vmatpush.msra.mxu0 0.0
    %162 = vmatpush.msra.mxu0 0.0
    %163 = vmatpush.msra.mxu0 0.0
    %164 = vmatpush.msra.mxu0 0.0
    %165 = vmatpush.msra.mxu0 0.0
    %166 = vmatpush.msra.mxu0 0.0
    %167 = vmatpush.msra.mxu0 0.0
    %168 = vmatpush.msra.mxu0 0.0
    %169 = vmatpush.msra.mxu0 %v153
    %170 = vmatpush.msra.mxu0 %v152
    %171 = vmatpush.msra.mxu0 %v151
    %172 = vmatpush.msra.mxu0 %v150
    %173 = vmatmul.f32.gmra.mxu0 %v155
    %v174 = vpop.f32.mrf.mxu0
    %v175 = vadd.f32 0.0, %v174
    %176 = vdwg.mxu0
    %v177 = vperm.slane %v175, 0
    %v178 = vadd.f32 %v116, %v177
    %179 = vst [vmem:[#allocation11] sm:$0xc] %v178
    %v180 = vld [vmem:[#allocation9] sm:$0xff]
    %v181 = vld [vmem:[#allocation9 + $0x8] sm:$0xff]
    %v182 = vld [vmem:[#allocation9 + $0x10] sm:$0xff]
    %v183 = vld [vmem:[#allocation9 + $0x18] sm:$0xff]
    %v185 = vrot.slane %v178, 2
    %v186 = vsel %vm123, %v185, 0
    %188 = vmatpush.msra.mxu0 0.0
    %189 = vmatpush.msra.mxu0 0.0
    %190 = vmatpush.msra.mxu0 0.0
    %191 = vmatpush.msra.mxu0 0.0
    %192 = vmatpush.msra.mxu0 0.0
    %193 = vmatpush.msra.mxu0 0.0
    %194 = vmatpush.msra.mxu0 0.0
    %195 = vmatpush.msra.mxu0 0.0
    %196 = vmatpush.msra.mxu0 0.0
    %197 = vmatpush.msra.mxu0 0.0
    %198 = vmatpush.msra.mxu0 0.0
    %199 = vmatpush.msra.mxu0 0.0
    %200 = vmatpush.msra.mxu0 %v183
    %201 = vmatpush.msra.mxu0 %v182
    %202 = vmatpush.msra.mxu0 %v181
    %203 = vmatpush.msra.mxu0 %v180
    %204 = vmatmul.f32.gmra.mxu0 %v186
    %v205 = vpop.f32.mrf.mxu0
    %v206 = vadd.f32 0.0, %v205
    %207 = vdwg.mxu0
    %v208 = vperm.slane %v206, 0
    %v209 = vadd.f32 %v116, %v208
    %210 = vst [vmem:[#allocation11] sm:$0x30] %v209
    %v211 = vld [vmem:[#allocation9] sm:$0xff]
    %v212 = vld [vmem:[#allocation9 + $0x8] sm:$0xff]
    %v213 = vld [vmem:[#allocation9 + $0x10] sm:$0xff]
    %v214 = vld [vmem:[#allocation9 + $0x18] sm:$0xff]
    %v216 = vrot.slane %v209, 4
    %v217 = vsel %vm123, %v216, 0
    %219 = vmatpush.msra.mxu0 0.0
    %220 = vmatpush.msra.mxu0 0.0
    %221 = vmatpush.msra.mxu0 0.0
    %222 = vmatpush.msra.mxu0 0.0
    %223 = vmatpush.msra.mxu0 0.0
    %224 = vmatpush.msra.mxu0 0.0
    %225 = vmatpush.msra.mxu0 0.0
    %226 = vmatpush.msra.mxu0 0.0
    %227 = vmatpush.msra.mxu0 0.0
    %228 = vmatpush.msra.mxu0 0.0
    %229 = vmatpush.msra.mxu0 0.0
    %230 = vmatpush.msra.mxu0 0.0
    %231 = vmatpush.msra.mxu0 %v214
    %232 = vmatpush.msra.mxu0 %v213
    %233 = vmatpush.msra.mxu0 %v212
    %234 = vmatpush.msra.mxu0 %v211
    %235 = vmatmul.f32.gmra.mxu0 %v217
    %v236 = vpop.f32.mrf.mxu0
    %v237 = vadd.f32 0.0, %v236
    %238 = vdwg.mxu0
    %v239 = vperm.slane %v237, 0
    %v240 = vadd.f32 %v116, %v239
    %241 = vst [vmem:[#allocation11] sm:$0xc0] %v240
    %vm242 = vcmask 260102
    %243 = vst.msk [vmem:[#allocation2 - $0x6] sm:$0x40] %vm242, %v240
    // Predicated region
    $region42: #{tpu_custom_call.1} parent=1 // pred_check
      _
    $region43: #{tpu_custom_call.1} parent=1 // pred_check_branch
      %245 = sbr.rel (0) target = $region45
    $region44: #{tpu_custom_call.1} parent=1 // pred_region
      %247 = vsyncadd [#allocation5], 0
      %s249 = sshll.u32 [#allocation11], 4
      %s250 = int_to_ptr.vmem [resolvable:$true] %s249
      %s251 = sshll.u32 %s5, 4
      %s252 = int_to_ptr.hbm [resolvable:$true] %s251
      %254 = dma.vmem_to_hbm [thread:$0]  %s250, 128, %s252, [#allocation5]
    $region45: #{tpu_custom_call.1} parent=1 // pred_fallthru
      _
    // Predicated region
    $region46: #{tpu_custom_call.1} parent=1 // pred_check
      _
    $region47: #{tpu_custom_call.1} parent=1 // pred_check_branch
      %256 = sbr.rel (0) target = $region49
    $region48: #{tpu_custom_call.1} parent=1 // pred_region
      %258 = dma.done [#allocation5], 128
    $region49: #{tpu_custom_call.1} parent=1 // pred_fallthru
      _
    %259 = vsyncpa [#allocation4], 1
    %260 = vsyncpa [#allocation7], 1
    %261 = vsyncpa [#allocation10], 1
    %262 = vsyncpa [#allocation5], 1

</llo_original>
